<compile_context>
chip_gen: v5e
topology: v5e:2x2
jax: 0.10.0
libtpu: 0.0.40
codegen_flags: <defaults>
</compile_context>

<pallas_src>
import functools

import jax
import jax.numpy as jnp
from jax.experimental import pallas as pl
from jax.experimental.pallas import tpu as pltpu

EPS = 1e-5
NEG_SLOPE = 0.01


def _linear_act_stats_kernel(x_ref, w_ref, b_ref, y_ref, sum_ref, sq_ref,
                             *, n_valid, tile_n, masked):
    """Pass 1: y = LeakyReLU(x @ W + b); accumulate per-column sum / sumsq."""
    i = pl.program_id(0)

    @pl.when(i == 0)
    def _():
        sum_ref[...] = jnp.zeros_like(sum_ref)
        sq_ref[...] = jnp.zeros_like(sq_ref)

    # Linear: bf16 operands on the MXU, f32 accumulation, f32 epilogue.
    x = x_ref[...].astype(jnp.bfloat16)
    y = jnp.dot(x, w_ref[...], preferred_element_type=jnp.float32) + b_ref[...]
    # LeakyReLU(0.01) as a single mul + max (no compare/select pair).
    y = jnp.maximum(y, NEG_SLOPE * y)
    y_ref[...] = y

    if masked:  # static flag: only when the batch was padded to a tile multiple
        row = i * tile_n + jax.lax.broadcasted_iota(jnp.int32, y.shape, 0)
        y = jnp.where(row < n_valid, y, 0.0)

    sum_ref[...] += jnp.sum(y, axis=0, keepdims=True)
    sq_ref[...] += jnp.sum(y * y, axis=0, keepdims=True)


def _bn_apply_kernel(y_ref, sum_ref, sq_ref, gamma_ref, beta_ref, o_ref,
                     *, n_valid):
    """Pass 2: o = y * scale + shift with the BN affine folded per column."""
    inv_n = 1.0 / n_valid
    mean = sum_ref[...] * inv_n
    var = jnp.maximum(sq_ref[...] * inv_n - mean * mean, 0.0)  # biased variance
    scale = gamma_ref[...] * jax.lax.rsqrt(var + EPS)
    shift = beta_ref[...] - mean * scale
    o_ref[...] = y_ref[...] * scale + shift


def block_forward(x, weight, bias, gamma, beta, *, max_tile_n=512):
    """Forward of Block(input_size, output_size), training mode.

    x:      [N, Din]   float32
    weight: [Dout, Din] (PyTorch nn.Linear layout)
    bias, gamma, beta: [Dout]
    returns [N, Dout]  float32
    """
    N, Din = x.shape
    Dout = weight.shape[0]

    # Lane-dense feature dim (multiple of 128) and 8-aligned batch dim.
    dout_p = ((Dout + 127) // 128) * 128
    n_p = ((N + 7) // 8) * 8
    tile_n = 8
    for t in (max_tile_n, 512, 256, 128, 64, 32, 16, 8):
        if 8 <= t <= n_p and t % 8 == 0 and n_p % t == 0:
            tile_n = t
            break
    grid = (n_p // tile_n,)
    masked = n_p != N

    # Pad / lay out parameters: weight pre-transposed to [Din, Dout_p] in bf16
    # (MXU-native, halves its HBM/VMEM footprint); epilogue vectors stay f32.
    x_p = x if not masked else jnp.zeros((n_p, Din), x.dtype).at[:N].set(x)
    w_t = jnp.zeros((Din, dout_p), jnp.bfloat16).at[:, :Dout].set(
        weight.T.astype(jnp.bfloat16))
    b_p = jnp.zeros((1, dout_p), jnp.float32).at[:, :Dout].set(
        bias.reshape(1, -1).astype(jnp.float32))
    g_p = jnp.zeros((1, dout_p), jnp.float32).at[:, :Dout].set(
        gamma.reshape(1, -1).astype(jnp.float32))
    be_p = jnp.zeros((1, dout_p), jnp.float32).at[:, :Dout].set(
        beta.reshape(1, -1).astype(jnp.float32))

    # Explicit VMEM budget: resident W + double-buffered x/y tiles + headroom.
    # TODO(synk): also tile the contraction dim (Din) when W alone approaches
    # the budget (needed for very large layers on v7x's 64 MiB VMEM).
    need = (Din * dout_p * 2                # resident bf16 weight tile
            + 2 * tile_n * Din * 4          # double-buffered x tiles
            + 3 * 2 * tile_n * dout_p * 4   # double-buffered y/o tiles
            + 8 * dout_p * 4)               # bias / gamma / beta / stats rows
    vmem_limit = int(min(112 * 2**20, max(16 * 2**20, 2 * need)))

    vec_spec = pl.BlockSpec((1, dout_p), lambda i: (0, 0))

    # ---- Pass 1: Linear + LeakyReLU, global per-column sum / sumsq ----------
    y, col_sum, col_sq = pl.pallas_call(
        functools.partial(_linear_act_stats_kernel,
                          n_valid=N, tile_n=tile_n, masked=masked),
        out_shape=(
            jax.ShapeDtypeStruct((n_p, dout_p), jnp.float32),
            jax.ShapeDtypeStruct((1, dout_p), jnp.float32),
            jax.ShapeDtypeStruct((1, dout_p), jnp.float32),
        ),
        grid=grid,
        in_specs=[
            pl.BlockSpec((tile_n, Din), lambda i: (i, 0)),
            pl.BlockSpec((Din, dout_p), lambda i: (0, 0)),
            vec_spec,
        ],
        out_specs=(
            pl.BlockSpec((tile_n, dout_p), lambda i: (i, 0)),
            vec_spec,   # resident accumulators (same block every grid step)
            vec_spec,
        ),
        compiler_params=pltpu.CompilerParams(
            # BN stats accumulate across the batch axis -> "arbitrary".
            # TODO(synk): on v7x megacore, compute per-core partial stats and
            # combine them before pass 2 so this axis could be "parallel".
            dimension_semantics=("arbitrary",),
            vmem_limit_bytes=vmem_limit),
    )(x_p, w_t, b_p)

    # ---- Pass 2: apply folded BatchNorm affine ------------------------------
    out = pl.pallas_call(
        functools.partial(_bn_apply_kernel, n_valid=N),
        out_shape=jax.ShapeDtypeStruct((n_p, dout_p), jnp.float32),
        grid=grid,
        in_specs=[
            pl.BlockSpec((tile_n, dout_p), lambda i: (i, 0)),
            vec_spec, vec_spec, vec_spec, vec_spec,
        ],
        out_specs=pl.BlockSpec((tile_n, dout_p), lambda i: (i, 0)),
        compiler_params=pltpu.CompilerParams(
            dimension_semantics=("parallel",),
            vmem_limit_bytes=vmem_limit),
    )(y, col_sum, col_sq, g_p, be_p)

    # TODO(synk): PyTorch BatchNorm1d also updates running_mean/running_var in
    # training mode; that module-state side effect is not produced here.
    return out[:N, :Dout]


if __name__ == "__main__":
    # Small shapes consistent with Block(input_size=32, output_size=64).
    N, Din, Dout = 8, 32, 64

    key = jax.random.PRNGKey(0)
    kx, kw, kb = jax.random.split(key, 3)

    x = jax.random.normal(kx, (N, Din), dtype=jnp.float32)

    # nn.Linear-style init U(-1/sqrt(Din), 1/sqrt(Din)); BN init gamma=1, beta=0.
    bound = 1.0 / (Din ** 0.5)
    weight = jax.random.uniform(kw, (Dout, Din), minval=-bound, maxval=bound,
                                dtype=jnp.float32)
    bias = jax.random.uniform(kb, (Dout,), minval=-bound, maxval=bound,
                              dtype=jnp.float32)
    gamma = jnp.ones((Dout,), dtype=jnp.float32)
    beta = jnp.zeros((Dout,), dtype=jnp.float32)

    out = jax.block_until_ready(block_forward(x, weight, bias, gamma, beta))
    assert out.shape == (N, Dout)

    # Pure-JAX f32 reference of the same forward math (PyTorch semantics).
    y_ref = x @ weight.T + bias
    y_ref = jnp.where(y_ref >= 0, y_ref, NEG_SLOPE * y_ref)
    m = y_ref.mean(axis=0, keepdims=True)
    v = ((y_ref - m) ** 2).mean(axis=0, keepdims=True)
    y_ref = (y_ref - m) / jnp.sqrt(v + EPS) * gamma + beta

    # bf16 matmul operands (f32 accumulation) -> relaxed tolerance vs f32 ref.
    assert jnp.allclose(out, y_ref, atol=3e-2, rtol=3e-2), (
        float(jnp.max(jnp.abs(out - y_ref))))

    print("KERNEL_OK")
</pallas_src>

<mosaic_0001>
module attributes {stable_mosaic.version = 11 : i64} {
  func.func @_linear_act_stats_kernel(%arg0: i32, %arg1: memref<8x32xf32, #tpu.memory_space<vmem>>, %arg2: memref<32x128xbf16, #tpu.memory_space<vmem>>, %arg3: memref<1x128xf32, #tpu.memory_space<vmem>>, %arg4: memref<8x128xf32, #tpu.memory_space<vmem>>, %arg5: memref<1x128xf32, #tpu.memory_space<vmem>>, %arg6: memref<1x128xf32, #tpu.memory_space<vmem>>) attributes {dimension_semantics = [#tpu.dimension_semantics<arbitrary>], iteration_bounds = array<i64: 1>, scalar_prefetch = 0 : i64, scratch_operands = 0 : i64, tpu.core_type = #tpu.core_type<tc>, window_params = [{transform_indices = @transform_0, window_bounds = array<i64: 8, 32>}, {pipeline_mode = #tpu.pipeline_mode<synchronous>, transform_indices = @transform_1, window_bounds = array<i64: 32, 128>}, {pipeline_mode = #tpu.pipeline_mode<synchronous>, transform_indices = @transform_2, window_bounds = array<i64: 1, 128>}, {transform_indices = @transform_3, window_bounds = array<i64: 8, 128>}, {pipeline_mode = #tpu.pipeline_mode<synchronous>, transform_indices = @transform_4, window_bounds = array<i64: 1, 128>}, {pipeline_mode = #tpu.pipeline_mode<synchronous>, transform_indices = @transform_5, window_bounds = array<i64: 1, 128>}]} {
    %c0_i32 = arith.constant 0 : i32
    %0 = arith.cmpi eq, %arg0, %c0_i32 : i32
    %1 = arith.extui %0 : i1 to i32
    %c0_i32_0 = arith.constant 0 : i32
    %2 = arith.cmpi ne, %1, %c0_i32_0 : i32
    scf.if %2 {
      %cst_19 = arith.constant 0.000000e+00 : f32
      %25 = vector.broadcast %cst_19 : f32 to vector<1x128xf32>
      %c0_20 = arith.constant 0 : index
      %c0_21 = arith.constant 0 : index
      %26 = vector.load %arg5[%c0_20, %c0_21] : memref<1x128xf32, #tpu.memory_space<vmem>>, vector<1x128xf32>
      tpu.vector_store %arg5[%c0_20, %c0_21], %25 {strides = array<i32>} : memref<1x128xf32, #tpu.memory_space<vmem>>, vector<1x128xf32>,
      %cst_22 = arith.constant 0.000000e+00 : f32
      %27 = vector.broadcast %cst_22 : f32 to vector<1x128xf32>
      %c0_23 = arith.constant 0 : index
      %c0_24 = arith.constant 0 : index
      %28 = vector.load %arg6[%c0_23, %c0_24] : memref<1x128xf32, #tpu.memory_space<vmem>>, vector<1x128xf32>
      tpu.vector_store %arg6[%c0_23, %c0_24], %27 {strides = array<i32>} : memref<1x128xf32, #tpu.memory_space<vmem>>, vector<1x128xf32>,
    } else {
    }
    %c0 = arith.constant 0 : index
    %c0_1 = arith.constant 0 : index
    %3 = vector.load %arg1[%c0, %c0_1] : memref<8x32xf32, #tpu.memory_space<vmem>>, vector<8x32xf32>
    %4 = arith.truncf %3 : vector<8x32xf32> to vector<8x32xbf16>
    %c0_2 = arith.constant 0 : index
    %c0_3 = arith.constant 0 : index
    %5 = vector.load %arg2[%c0_2, %c0_3] : memref<32x128xbf16, #tpu.memory_space<vmem>>, vector<32x128xbf16>
    %cst = arith.constant dense<0.000000e+00> : vector<8x128xf32>
    %6 = tpu.matmul %4, %5, %cst {dimension_numbers = #tpu.dot_dimension_numbers<[1], [0], [0], [1], [0, 0, 1, 1], [], []>} : vector<8x32xbf16>, vector<32x128xbf16>, vector<8x128xf32> -> vector<8x128xf32>
    %c0_4 = arith.constant 0 : index
    %c0_5 = arith.constant 0 : index
    %7 = vector.load %arg3[%c0_4, %c0_5] : memref<1x128xf32, #tpu.memory_space<vmem>>, vector<1x128xf32>
    %8 = vector.broadcast %7 : vector<1x128xf32> to vector<8x128xf32>
    %9 = arith.addf %6, %8 : vector<8x128xf32>
    %cst_6 = arith.constant 0.00999999977 : f32
    %10 = vector.broadcast %cst_6 : f32 to vector<8x128xf32>
    %11 = arith.mulf %10, %9 : vector<8x128xf32>
    %12 = arith.maximumf %9, %11 : vector<8x128xf32>
    %c0_7 = arith.constant 0 : index
    %c0_8 = arith.constant 0 : index
    %13 = vector.load %arg4[%c0_7, %c0_8] : memref<8x128xf32, #tpu.memory_space<vmem>>, vector<8x128xf32>
    tpu.vector_store %arg4[%c0_7, %c0_8], %12 {strides = array<i32>} : memref<8x128xf32, #tpu.memory_space<vmem>>, vector<8x128xf32>,
    %c0_9 = arith.constant 0 : index
    %c0_10 = arith.constant 0 : index
    %14 = vector.load %arg5[%c0_9, %c0_10] : memref<1x128xf32, #tpu.memory_space<vmem>>, vector<1x128xf32>
    %cst_11 = arith.constant dense<0.000000e+00> : vector<128xf32>
    %15 = vector.multi_reduction <add>, %12, %cst_11 [0] : vector<8x128xf32> to vector<128xf32>
    %16 = vector.shape_cast %15 : vector<128xf32> to vector<1x128xf32>
    %17 = arith.addf %14, %16 : vector<1x128xf32>
    %c0_12 = arith.constant 0 : index
    %c0_13 = arith.constant 0 : index
    %18 = vector.load %arg5[%c0_12, %c0_13] : memref<1x128xf32, #tpu.memory_space<vmem>>, vector<1x128xf32>
    tpu.vector_store %arg5[%c0_12, %c0_13], %17 {strides = array<i32>} : memref<1x128xf32, #tpu.memory_space<vmem>>, vector<1x128xf32>,
    %c0_14 = arith.constant 0 : index
    %c0_15 = arith.constant 0 : index
    %19 = vector.load %arg6[%c0_14, %c0_15] : memref<1x128xf32, #tpu.memory_space<vmem>>, vector<1x128xf32>
    %20 = arith.mulf %12, %12 : vector<8x128xf32>
    %cst_16 = arith.constant dense<0.000000e+00> : vector<128xf32>
    %21 = vector.multi_reduction <add>, %20, %cst_16 [0] : vector<8x128xf32> to vector<128xf32>
    %22 = vector.shape_cast %21 : vector<128xf32> to vector<1x128xf32>
    %23 = arith.addf %19, %22 : vector<1x128xf32>
    %c0_17 = arith.constant 0 : index
    %c0_18 = arith.constant 0 : index
    %24 = vector.load %arg6[%c0_17, %c0_18] : memref<1x128xf32, #tpu.memory_space<vmem>>, vector<1x128xf32>
    tpu.vector_store %arg6[%c0_17, %c0_18], %23 {strides = array<i32>} : memref<1x128xf32, #tpu.memory_space<vmem>>, vector<1x128xf32>,
    return
  }
  func.func @transform_0(%arg0: i32) -> (i32, i32) {
    %c0_i32 = arith.constant 0 : i32
    %c0_i32_0 = arith.constant 0 : i32
    return %arg0, %c0_i32 : i32, i32
  }
  func.func @transform_1(%arg0: i32) -> (i32, i32) {
    %c0_i32 = arith.constant 0 : i32
    %c0_i32_0 = arith.constant 0 : i32
    %c0_i32_1 = arith.constant 0 : i32
    return %c0_i32, %c0_i32_0 : i32, i32
  }
  func.func @transform_2(%arg0: i32) -> (i32, i32) {
    %c0_i32 = arith.constant 0 : i32
    %c0_i32_0 = arith.constant 0 : i32
    %c0_i32_1 = arith.constant 0 : i32
    return %c0_i32, %c0_i32_0 : i32, i32
  }
  func.func @transform_3(%arg0: i32) -> (i32, i32) {
    %c0_i32 = arith.constant 0 : i32
    %c0_i32_0 = arith.constant 0 : i32
    return %arg0, %c0_i32 : i32, i32
  }
  func.func @transform_4(%arg0: i32) -> (i32, i32) {
    %c0_i32 = arith.constant 0 : i32
    %c0_i32_0 = arith.constant 0 : i32
    %c0_i32_1 = arith.constant 0 : i32
    return %c0_i32, %c0_i32_0 : i32, i32
  }
  func.func @transform_5(%arg0: i32) -> (i32, i32) {
    %c0_i32 = arith.constant 0 : i32
    %c0_i32_0 = arith.constant 0 : i32
    %c0_i32_1 = arith.constant 0 : i32
    return %c0_i32, %c0_i32_0 : i32, i32
  }
}

</mosaic_0001>

<llo_original>
// kernel: tpu_custom_call.1
$region0: #{tpu_custom_call.1}
  #allocation0 [shape = 'u32[]', space=smem, size = 0x4, offset = 0x4, fixed_abs, tag = 'smem constant byte address 0x4 - core index']
  #allocation1 [shape = 'u32[72,128]{1,0:T(1,128)}', space=vmem, size = 0x9000, scoped, tag = 'internal scratch']
  %s0 = inlined_call_operand.hbm [shape: f32[8,32], index: 0, kind: input, shape index: {}]
  %s1 = inlined_call_operand.hbm [shape: bf16[32,128], index: 1, kind: input, shape index: {}]
  %s2 = inlined_call_operand.vmem [shape: f32[1,128], index: 2, kind: input, shape index: {}]
  %s3 = inlined_call_operand.hbm [shape: f32[8,128], index: 3, kind: output, shape index: {0}]
  %s4 = inlined_call_operand.hbm [shape: f32[1,128], index: 4, kind: output, shape index: {1}]
  %s5 = inlined_call_operand.hbm [shape: f32[1,128], index: 5, kind: output, shape index: {2}]
  %6 = xla_tuple %s3, %s4, %s5
  %s7 = sld [smem:[#allocation0]]
  $region50: #{tpu_custom_call.1} parent=0
    _
  %s9 = ssub.s32 1, %s7
  %s10 = scalar_select 0, %s9, %s7
  $region1: #{tpu_custom_call.1} parent=0
    #allocation2 [shape = 'u8[4096]{0}', space=vmem, size = 0x1000, scoped, tag = 'input window, operand 0, single buffered']
    #allocation3 [shape = 's32[1]{0}', space=sflag, size = 0x4, scoped, tag = 'scoped memory for tpu_custom_call.1']
    #allocation4 [shape = 's32[1]{0}', space=sflag, size = 0x4, scoped, tag = 'scoped memory for tpu_custom_call.1']
    #allocation5 [shape = 'u8[8192]{0}', space=vmem, size = 0x2000, scoped, tag = 'input window, operand 1, single buffered']
    #allocation6 [shape = 's32[1]{0}', space=sflag, size = 0x4, scoped, tag = 'scoped memory for tpu_custom_call.1']
    #allocation7 [shape = 'u8[4096]{0}', space=vmem, size = 0x1000, scoped, tag = 'output window, operand 0, single buffered']
    #allocation8 [shape = 'u8[512]{0}', space=vmem, size = 0x400, scoped, tag = 'output window, operand 1, single buffered']
    #allocation9 [shape = 's32[1]{0}', space=sflag, size = 0x4, scoped, tag = 'scoped memory for tpu_custom_call.1']
    #allocation10 [shape = 'u8[512]{0}', space=vmem, size = 0x400, scoped, tag = 'output window, operand 2, single buffered']
    %11 = vsyncpa [#allocation3], 0
    %12 = vsyncpa [#allocation6], 0
    %13 = vsyncpa [#allocation4], 0
    %14 = vsyncpa [#allocation9], 0
    // Predicated region
    $region2: #{tpu_custom_call.1} parent=1 // pred_check
      _
    $region3: #{tpu_custom_call.1} parent=1 // pred_check_branch
      %16 = sbr.rel (0) target = $region5
    $region4: #{tpu_custom_call.1} parent=1 // pred_region
      %18 = vsyncadd [#allocation3], 0
      %s20 = sshll.u32 %s0, 4
      %s21 = int_to_ptr.hbm [resolvable:$true] %s20
      %s22 = sshll.u32 [#allocation2], 4
      %s23 = int_to_ptr.vmem [resolvable:$true] %s22
      %25 = dma.hbm_to_vmem [thread:$0]  %s21, 128, %s23, [#allocation3]
    $region5: #{tpu_custom_call.1} parent=1 // pred_fallthru
      _
    // Predicated region
    $region6: #{tpu_custom_call.1} parent=1 // pred_check
      _
    $region7: #{tpu_custom_call.1} parent=1 // pred_check_branch
      %27 = sbr.rel (0) target = $region9
    $region8: #{tpu_custom_call.1} parent=1 // pred_region
      %29 = vsyncadd [#allocation6], 0
      %s30 = sshll.u32 %s1, 4
      %s31 = int_to_ptr.hbm [resolvable:$true] %s30
      %s32 = sshll.u32 [#allocation5], 4
      %s33 = int_to_ptr.vmem [resolvable:$true] %s32
      %38 = dma.hbm_to_vmem [thread:$0]  %s31, 256, %s33, [#allocation6], 64, 64, 4
    $region9: #{tpu_custom_call.1} parent=1 // pred_fallthru
      _
    // Predicated region
    $region10: #{tpu_custom_call.1} parent=1 // pred_check
      _
    $region11: #{tpu_custom_call.1} parent=1 // pred_check_branch
      %40 = sbr.rel (0) target = $region13
    $region12: #{tpu_custom_call.1} parent=1 // pred_region
      _
    $region13: #{tpu_custom_call.1} parent=1 // pred_fallthru
      _
    // Predicated region
    $region14: #{tpu_custom_call.1} parent=1 // pred_check
      _
    $region15: #{tpu_custom_call.1} parent=1 // pred_check_branch
      %42 = sbr.rel (0) target = $region17
    $region16: #{tpu_custom_call.1} parent=1 // pred_region
      %44 = dma.done [#allocation3], 128
    $region17: #{tpu_custom_call.1} parent=1 // pred_fallthru
      _
    // Predicated region
    $region18: #{tpu_custom_call.1} parent=1 // pred_check
      _
    $region19: #{tpu_custom_call.1} parent=1 // pred_check_branch
      %46 = sbr.rel (0) target = $region21
    $region20: #{tpu_custom_call.1} parent=1 // pred_region
      %48 = dma.done [#allocation6], 256
    $region21: #{tpu_custom_call.1} parent=1 // pred_fallthru
      _
    %p50 = scmp.eq.s32.totalorder 0, 0
    // Predicated region
    $region22: #{tpu_custom_call.1} parent=1 // pred_check
      %p51 = pneg %p50
    $region23: #{tpu_custom_call.1} parent=1 // pred_check_branch
      %53 = sbr.rel (%p51) target = $region25
    $region24: #{tpu_custom_call.1} parent=1 // pred_region
      %54 = vst [vmem:[#allocation8] sm:$0x1] 0.0
      %55 = vst [vmem:[#allocation10] sm:$0x1] 0.0
    $region25: #{tpu_custom_call.1} parent=1 // pred_fallthru
      _
    %v56 = vld [vmem:[#allocation2] sm:$0xff]
    %v57 = vpack.c.bf16 %v56, %v56
    %v58 = vld [vmem:[#allocation5] sm:$0xf]
    %v59 = vld [vmem:[#allocation5 + $0x4] sm:$0xf]
    %v60 = vld [vmem:[#allocation5 + $0x8] sm:$0xf]
    %v61 = vld [vmem:[#allocation5 + $0xc] sm:$0xf]
    %v62 = vld [vmem:[%s2] sm:$0x1]
    %v64 = vperm.slane %v62, 0
    %v70 = vunpack.c.l.b16 %v58
    %v71 = vunpack.c.l.b16 %v59
    %v72 = vunpack.c.l.b16 %v60
    %v73 = vunpack.c.l.b16 %v61
    %v74 = vpack.c.b16 %v71, %v70
    %v75 = vpack.c.b16 %v73, %v72
    %vm78 = vcmask 261120
    %v80 = vsel %vm78, %v57, 0
    %82 = vmatpush.bf16.msra.mxu0 0
    %83 = vmatpush.bf16.msra.mxu0 0
    %84 = vmatpush.bf16.msra.mxu0 0
    %85 = vmatpush.bf16.msra.mxu0 0
    %86 = vmatpush.bf16.msra.mxu0 0
    %87 = vmatpush.bf16.msra.mxu0 0
    %88 = vmatpush.bf16.msra.mxu0 %v75
    %89 = vmatpush.bf16.msra.mxu0 %v74
    %90 = vmatmul.bf16.gmra.mxu0 %v80
    %v91 = vpop.f32.mrf.mxu0
    %v92 = vadd.f32 %v64, %v91
    %v93 = vpop.f32.mrf.mxu0
    %94 = vdwg.mxu0
    %v95 = vmul.f32 %v92, 0.01
    %v96 = vmax.f32 %v92, %v95
    %97 = vst [vmem:[#allocation7] sm:$0xff] %v96
    %v98 = vld [vmem:[#allocation8] sm:$0x1]
    %v99 = vrot.slane %v96, 4
    %v100 = vadd.f32 %v96, %v99
    %v101 = vrot.slane %v100, 2
    %v102 = vadd.f32 %v100, %v101
    %v103 = vrot.slane %v102, 1
    %v104 = vadd.f32 %v102, %v103
    %v105 = vadd.f32 %v98, %v104
    %106 = vst [vmem:[#allocation8] sm:$0x1] %v105
    %v107 = vld [vmem:[#allocation10] sm:$0x1]
    %v108 = vmul.f32 %v96, %v96
    %v109 = vrot.slane %v108, 4
    %v110 = vadd.f32 %v108, %v109
    %v111 = vrot.slane %v110, 2
    %v112 = vadd.f32 %v110, %v111
    %v113 = vrot.slane %v112, 1
    %v114 = vadd.f32 %v112, %v113
    %v115 = vadd.f32 %v107, %v114
    %116 = vst [vmem:[#allocation10] sm:$0x1] %v115
    // Predicated region
    $region26: #{tpu_custom_call.1} parent=1 // pred_check
      _
    $region27: #{tpu_custom_call.1} parent=1 // pred_check_branch
      %118 = sbr.rel (0) target = $region29
    $region28: #{tpu_custom_call.1} parent=1 // pred_region
      %120 = vsyncadd [#allocation4], 0
      %s122 = sshll.u32 [#allocation7], 4
      %s123 = int_to_ptr.vmem [resolvable:$true] %s122
      %s124 = sshll.u32 %s3, 4
      %s125 = int_to_ptr.hbm [resolvable:$true] %s124
      %127 = dma.vmem_to_hbm [thread:$0]  %s123, 128, %s125, [#allocation4]
    $region29: #{tpu_custom_call.1} parent=1 // pred_fallthru
      _
    // Predicated region
    $region30: #{tpu_custom_call.1} parent=1 // pred_check
      _
    $region31: #{tpu_custom_call.1} parent=1 // pred_check_branch
      %129 = sbr.rel (0) target = $region33
    $region32: #{tpu_custom_call.1} parent=1 // pred_region
      %131 = vsyncadd [#allocation9], 0
      %s133 = sshll.u32 [#allocation8], 4
      %s134 = int_to_ptr.vmem [resolvable:$true] %s133
      %s135 = sshll.u32 %s4, 4
      %s136 = int_to_ptr.hbm [resolvable:$true] %s135
      %138 = dma.vmem_to_hbm [thread:$0]  %s134, 16, %s136, [#allocation9]
    $region33: #{tpu_custom_call.1} parent=1 // pred_fallthru
      _
    // Predicated region
    $region34: #{tpu_custom_call.1} parent=1 // pred_check
      _
    $region35: #{tpu_custom_call.1} parent=1 // pred_check_branch
      %140 = sbr.rel (0) target = $region37
    $region36: #{tpu_custom_call.1} parent=1 // pred_region
      %142 = vsyncadd [#allocation9], 0
      %s144 = sshll.u32 [#allocation10], 4
      %s145 = int_to_ptr.vmem [resolvable:$true] %s144
      %s146 = sshll.u32 %s5, 4
      %s147 = int_to_ptr.hbm [resolvable:$true] %s146
      %149 = dma.vmem_to_hbm [thread:$0]  %s145, 16, %s147, [#allocation9]
    $region37: #{tpu_custom_call.1} parent=1 // pred_fallthru
      _
    // Predicated region
    $region38: #{tpu_custom_call.1} parent=1 // pred_check
      _
    $region39: #{tpu_custom_call.1} parent=1 // pred_check_branch
      %151 = sbr.rel (0) target = $region41
    $region40: #{tpu_custom_call.1} parent=1 // pred_region
      %153 = dma.done [#allocation4], 128
    $region41: #{tpu_custom_call.1} parent=1 // pred_fallthru
      _
    // Predicated region
    $region42: #{tpu_custom_call.1} parent=1 // pred_check
      _
    $region43: #{tpu_custom_call.1} parent=1 // pred_check_branch
      %155 = sbr.rel (0) target = $region45
    $region44: #{tpu_custom_call.1} parent=1 // pred_region
      %157 = dma.done [#allocation9], 16
    $region45: #{tpu_custom_call.1} parent=1 // pred_fallthru
      _
    // Predicated region
    $region46: #{tpu_custom_call.1} parent=1 // pred_check
      _
    $region47: #{tpu_custom_call.1} parent=1 // pred_check_branch
      %159 = sbr.rel (0) target = $region49
    $region48: #{tpu_custom_call.1} parent=1 // pred_region
      %161 = dma.done [#allocation9], 16
    $region49: #{tpu_custom_call.1} parent=1 // pred_fallthru
      _
    %162 = vsyncpa [#allocation3], 1
    %163 = vsyncpa [#allocation6], 1
    %164 = vsyncpa [#allocation4], 1
    %165 = vsyncpa [#allocation9], 1

</llo_original>
